<compile_context>
chip_gen: v6e
topology: v6e:2x2x1
jax: 0.10.0
libtpu: 0.0.40
codegen_flags: <defaults>
</compile_context>

<pallas_src>
import functools

import jax
import jax.numpy as jnp
from jax.experimental import pallas as pl
from jax.experimental.pallas import tpu as pltpu


def _round_up(n, m):
    return ((n + m - 1) // m) * m


# --------------------------------------------------------------------------------------
# Kernel
# --------------------------------------------------------------------------------------
def gat_encoder_kernel(x_ref, adj_ref, w_ref, bias_ref, out_ref, *,
                       num_heads, d_input, d_hidden, d_latent, row_offsets):
    f32 = jnp.float32
    bf16 = jnp.bfloat16
    H = num_heads
    d = d_latent
    r_w1, r_w2, r_wg, r_wp, r_as, r_ad = row_offsets

    # Weight slab (bf16): one DMA; static 8-aligned row offsets, columns start at lane 0.
    w1 = w_ref[pl.ds(r_w1, d_input), pl.ds(0, d_hidden)]
    w2 = w_ref[pl.ds(r_w2, d_hidden), pl.ds(0, d)]
    wg = w_ref[pl.ds(r_wg, d), pl.ds(0, H * d)]          # [d, H*d] merged head projection
    wp = w_ref[pl.ds(r_wp, d), pl.ds(0, d)]
    att_src_w = w_ref[pl.ds(r_as, d), pl.ds(0, H)]       # W_h @ att_src_h, per column h
    att_dst_w = w_ref[pl.ds(r_ad, d), pl.ds(0, H)]       # W_h @ att_dst_h, per column h

    bias = bias_ref[...]                                  # (4, Dmax) f32
    b1 = bias[0:1, :d_hidden]
    b2 = bias[1:2, :d]
    bg = bias[2:3, :d]
    bp = bias[3:4, :d]

    # ---- pre_fc: Linear -> ReLU -> Dropout(0)=id -> Linear (bf16 MXU operands, f32 accum)
    x = x_ref[...].astype(bf16)
    h1 = jnp.maximum(jnp.dot(x, w1, preferred_element_type=f32) + b1, 0.0)
    z = jnp.dot(h1.astype(bf16), w2, preferred_element_type=f32) + b2        # [N, d] f32
    z_bf = z.astype(bf16)

    # ---- GATConv(d, d, heads=H, concat=False, add_self_loops=True) ---------------------
    cnt = adj_ref[...].astype(f32)                       # edge multiplicity j -> i
    s_bias = jnp.where(cnt > 0.0, 0.0, -1e30)            # additive mask, built once

    # Attention logits: no XLU transpose, no lane slices of a fused [N, 2H] slab.
    a_dst = jnp.dot(z_bf, att_dst_w, preferred_element_type=f32)             # [N, H]
    a_srcT = jax.lax.dot_general(                                            # [H, N]
        att_src_w, z_bf, dimension_numbers=(((0,), (1,)), ((), ())),
        preferred_element_type=f32)

    # All per-head projections in one MXU push.
    xs_all = jnp.dot(z_bf, wg, preferred_element_type=f32)                   # [N, H*d]

    acc = jnp.zeros((x_ref.shape[0], d), f32)
    for h in range(H):                                   # static unroll over heads
        # scores[i, j] = leaky_relu(a_dst[i] + a_src[j], 0.2) for edge j -> i
        s = a_dst[:, h:h + 1] + a_srcT[h:h + 1, :]       # [N_dst, N_src]
        s = jnp.where(s >= 0.0, s, 0.2 * s) + s_bias     # leaky(0.2) + additive mask
        m = jnp.max(s, axis=-1, keepdims=True)
        p = cnt * jnp.exp(s - m)                         # duplicate edges via multiplicity
        alpha = p * pl.reciprocal(jnp.sum(p, axis=-1, keepdims=True), approx=False)
        xs_h = xs_all[:, h * d:(h + 1) * d].astype(bf16)
        acc = acc + jnp.dot(alpha.astype(bf16), xs_h, preferred_element_type=f32)

    gat = acc * (1.0 / H) + bg                           # concat=False head mean + bias

    # ---- GATLayer epilogue: F.leaky_relu(0.01) -> Dropout(0)=id -> residual (f32 VPU) --
    gat = jnp.where(gat >= 0.0, gat, 0.01 * gat)
    gat = gat + z

    # ---- post_fc: Linear(d_latent, d_latent) --------------------------------------------
    out_ref[...] = (jnp.dot(gat.astype(bf16), wp, preferred_element_type=f32)
                    + bp).astype(out_ref.dtype)


# --------------------------------------------------------------------------------------
# Wrapper-side preprocessing (call ONCE and cache; pure latency on the inference path)
# --------------------------------------------------------------------------------------
def pack_gat_encoder_params(params, *, num_heads):
    """Parameter-derived tensors. Call once per model and reuse across forward calls."""
    H = num_heads
    d_input, d_hidden = params["w1"].shape
    d_latent = params["w_post"].shape[0]

    # Fold per-head attention vectors into the GAT projection:
    #   a_src[n, h] = <(z W_h)[n], att_src[h]> = (z @ (W_h att_src[h]))[n]
    wg3 = params["w_gat"].reshape(d_latent, H, d_latent)             # [d_in, H, d_out]
    attp_src = jnp.einsum("iho,ho->ih", wg3, params["att_src"])      # [d_in, H]
    attp_dst = jnp.einsum("iho,ho->ih", wg3, params["att_dst"])      # [d_in, H]

    # Pack all small matrices into one bf16 slab (one DMA descriptor instead of six).
    # Each block's rows are padded to a multiple of 8 so in-kernel slices stay aligned.
    blocks = [params["w1"], params["w2"], params["w_gat"], params["w_post"],
              attp_src, attp_dst]
    width = max(b.shape[1] for b in blocks)
    row_offsets, rows, r = [], [], 0
    for b in blocks:
        row_offsets.append(r)
        pr = _round_up(b.shape[0], 8)
        rows.append(jnp.zeros((pr, width), jnp.float32)
                    .at[:b.shape[0], :b.shape[1]].set(b))
        r += pr
    wslab = jnp.concatenate(rows, axis=0).astype(jnp.bfloat16)

    # Pack the four bias vectors into a single (4, Dmax) f32 input.
    dmax = max(d_hidden, d_latent)

    def _pad(b):
        b = b.reshape(1, -1)
        return jnp.pad(b, ((0, 0), (0, dmax - b.shape[1])))

    bias_pack = jnp.concatenate(
        [_pad(params["b1"]), _pad(params["b2"]),
         _pad(params["b_gat"]), _pad(params["b_post"])], axis=0).astype(jnp.float32)

    return dict(wslab=wslab, bias=bias_pack, row_offsets=tuple(row_offsets),
                num_heads=H, d_input=d_input, d_hidden=d_hidden, d_latent=d_latent)


def build_adjacency(edge_index, num_nodes):
    """Dense int8 edge-multiplicity matrix adj[i, j] = #edges j -> i. Build once per graph.

    Matches PyG GATConv: duplicate edges each count in the edge softmax; pre-existing
    self loops removed and exactly one self loop per node added.
    """
    src, dst = edge_index[0], edge_index[1]
    adj = jnp.zeros((num_nodes, num_nodes), jnp.int32).at[dst, src].add(1)
    diag = jnp.arange(num_nodes)
    adj = adj.at[diag, diag].set(1)
    return adj.astype(jnp.int8)            # 4x smaller HBM->VMEM DMA / VMEM residency


def gat_encoder_forward(x, adj, packed):
    N = x.shape[0]
    kernel = functools.partial(
        gat_encoder_kernel,
        num_heads=packed["num_heads"], d_input=packed["d_input"],
        d_hidden=packed["d_hidden"], d_latent=packed["d_latent"],
        row_offsets=packed["row_offsets"])
    vmem = pl.BlockSpec(memory_space=pltpu.MemorySpace.VMEM)
    # TODO(synk): for non-toy N (or batched graphs), add a grid over destination-row tiles
    # or a graph-batch axis with dimension_semantics=("parallel",) so v7x uses both
    # TensorCores, and re-derive per-generation tile budgets (v7x: 64 MiB physical VMEM,
    # budget ~TN*N*(2 int8 adj x2 buf + 4 f32 score + 2 bf16 alpha) bytes; v6e/v5e: raise
    # the 32/16 MiB scoped defaults via vmem_limit_bytes and use larger tiles).
    return pl.pallas_call(
        kernel,
        out_shape=jax.ShapeDtypeStruct((N, packed["d_latent"]), jnp.float32),
        in_specs=[vmem, vmem, vmem, vmem],
        out_specs=vmem,
        compiler_params=pltpu.CompilerParams(vmem_limit_bytes=32 * 1024 * 1024),
    )(x.astype(jnp.float32), adj, packed["wslab"], packed["bias"])


def gat_encoder(x, edge_index, params, *, num_heads):
    """Convenience one-shot API (prefer caching pack_gat_encoder_params/build_adjacency)."""
    packed = pack_gat_encoder_params(params, num_heads=num_heads)
    adj = build_adjacency(edge_index, x.shape[0])
    return gat_encoder_forward(x, adj, packed)


# --------------------------------------------------------------------------------------
# Pure-JAX f32 reference (mirrors the PyTorch module) and parameter init
# --------------------------------------------------------------------------------------
def gat_encoder_reference(x, edge_index, params, *, num_heads):
    H = num_heads
    N = x.shape[0]
    d_latent = params["w_post"].shape[0]

    h1 = jnp.maximum(x @ params["w1"] + params["b1"], 0.0)
    z = h1 @ params["w2"] + params["b2"]

    src, dst = edge_index[0], edge_index[1]
    cnt = jnp.zeros((N, N), jnp.float32).at[dst, src].add(1.0)
    diag = jnp.arange(N)
    cnt = cnt.at[diag, diag].set(1.0)
    mask = cnt > 0.0

    wg3 = params["w_gat"].reshape(d_latent, H, d_latent)
    zs = jnp.einsum("ni,iho->nho", z, wg3)                        # [N, H, d]
    a_src = jnp.einsum("nho,ho->nh", zs, params["att_src"])
    a_dst = jnp.einsum("nho,ho->nh", zs, params["att_dst"])

    s = a_dst[:, None, :] + a_src[None, :, :]                     # [N_dst, N_src, H]
    s = jnp.where(s >= 0.0, s, 0.2 * s)
    s = jnp.where(mask[:, :, None], s, -1e30)
    m = jnp.max(s, axis=1, keepdims=True)
    p = cnt[:, :, None] * jnp.exp(s - m)
    alpha = p / jnp.sum(p, axis=1, keepdims=True)

    gat = jnp.einsum("ijh,jho->iho", alpha, zs).mean(axis=1) + params["b_gat"]
    gat = jnp.where(gat >= 0.0, gat, 0.01 * gat)
    gat = gat + z
    return gat @ params["w_post"] + params["b_post"]


def init_params(key, d_input, d_hidden, d_latent, num_heads):
    ks = jax.random.split(key, 10)
    s = 0.1
    return {
        # pre_fc
        "w1": s * jax.random.normal(ks[0], (d_input, d_hidden), jnp.float32),
        "b1": s * jax.random.normal(ks[1], (1, d_hidden), jnp.float32),
        "w2": s * jax.random.normal(ks[2], (d_hidden, d_latent), jnp.float32),
        "b2": s * jax.random.normal(ks[3], (1, d_latent), jnp.float32),
        # GATConv (lin weight, attention vectors, output bias)
        "w_gat": s * jax.random.normal(ks[4], (d_latent, num_heads * d_latent), jnp.float32),
        "att_src": s * jax.random.normal(ks[5], (num_heads, d_latent), jnp.float32),
        "att_dst": s * jax.random.normal(ks[6], (num_heads, d_latent), jnp.float32),
        "b_gat": s * jax.random.normal(ks[7], (1, d_latent), jnp.float32),
        # post_fc
        "w_post": s * jax.random.normal(ks[8], (d_latent, d_latent), jnp.float32),
        "b_post": s * jax.random.normal(ks[9], (1, d_latent), jnp.float32),
    }


if __name__ == "__main__":
    N, E = 8, 20
    d_input, d_hidden, d_latent, num_heads = 16, 32, 16, 2

    key = jax.random.PRNGKey(0)
    kx, ke1, ke2, kp = jax.random.split(key, 4)

    x = jax.random.normal(kx, (N, d_input), jnp.float32)
    edge_index = jnp.stack([
        jax.random.randint(ke1, (E,), 0, N),   # source nodes j
        jax.random.randint(ke2, (E,), 0, N),   # target nodes i
    ], axis=0).astype(jnp.int32)
    params = init_params(kp, d_input, d_hidden, d_latent, num_heads)

    packed = pack_gat_encoder_params(params, num_heads=num_heads)   # once per model
    adj = build_adjacency(edge_index, N)                            # once per graph

    out = jax.block_until_ready(gat_encoder_forward(x, adj, packed))
    assert out.shape == (N, d_latent)
    assert bool(jnp.all(jnp.isfinite(out)))

    ref = gat_encoder_reference(x, edge_index, params, num_heads=num_heads)
    err = float(jnp.max(jnp.abs(out - ref)))
    assert err < 5e-2, f"max abs err vs f32 reference: {err}"

    print("KERNEL_OK")
</pallas_src>

<mosaic_0001>
module attributes {stable_mosaic.version = 11 : i64} {
  func.func @gat_encoder_kernel(%arg0: memref<8x16xf32, #tpu.memory_space<vmem>>, %arg1: memref<8x8xi8, #tpu.memory_space<vmem>>, %arg2: memref<112x32xbf16, #tpu.memory_space<vmem>>, %arg3: memref<4x32xf32, #tpu.memory_space<vmem>>, %arg4: memref<8x16xf32, #tpu.memory_space<vmem>>) attributes {dimension_semantics = [], scalar_prefetch = 0 : i64, scratch_operands = 0 : i64, tpu.core_type = #tpu.core_type<tc>} {
    %c0 = arith.constant 0 : index
    %c0_0 = arith.constant 0 : index
    %0 = vector.load %arg2[%c0, %c0_0] : memref<112x32xbf16, #tpu.memory_space<vmem>>, vector<16x32xbf16>
    %c16 = arith.constant 16 : index
    %c0_1 = arith.constant 0 : index
    %1 = vector.load %arg2[%c16, %c0_1] : memref<112x32xbf16, #tpu.memory_space<vmem>>, vector<32x16xbf16>
    %c48 = arith.constant 48 : index
    %c0_2 = arith.constant 0 : index
    %2 = vector.load %arg2[%c48, %c0_2] : memref<112x32xbf16, #tpu.memory_space<vmem>>, vector<16x32xbf16>
    %c64 = arith.constant 64 : index
    %c0_3 = arith.constant 0 : index
    %3 = vector.load %arg2[%c64, %c0_3] : memref<112x32xbf16, #tpu.memory_space<vmem>>, vector<16x16xbf16>
    %c80 = arith.constant 80 : index
    %c0_4 = arith.constant 0 : index
    %4 = vector.load %arg2[%c80, %c0_4] : memref<112x32xbf16, #tpu.memory_space<vmem>>, vector<16x2xbf16>
    %c96 = arith.constant 96 : index
    %c0_5 = arith.constant 0 : index
    %5 = vector.load %arg2[%c96, %c0_5] : memref<112x32xbf16, #tpu.memory_space<vmem>>, vector<16x2xbf16>
    %c0_6 = arith.constant 0 : index
    %c0_7 = arith.constant 0 : index
    %6 = vector.load %arg3[%c0_6, %c0_7] : memref<4x32xf32, #tpu.memory_space<vmem>>, vector<4x32xf32>
    %7 = vector.extract_strided_slice %6 {offsets = [0, 0], sizes = [1, 32], strides = [1, 1]} : vector<4x32xf32> to vector<1x32xf32>
    %8 = vector.extract_strided_slice %6 {offsets = [1, 0], sizes = [1, 16], strides = [1, 1]} : vector<4x32xf32> to vector<1x16xf32>
    %9 = vector.extract_strided_slice %6 {offsets = [2, 0], sizes = [1, 16], strides = [1, 1]} : vector<4x32xf32> to vector<1x16xf32>
    %10 = vector.extract_strided_slice %6 {offsets = [3, 0], sizes = [1, 16], strides = [1, 1]} : vector<4x32xf32> to vector<1x16xf32>
    %c0_8 = arith.constant 0 : index
    %c0_9 = arith.constant 0 : index
    %11 = vector.load %arg0[%c0_8, %c0_9] : memref<8x16xf32, #tpu.memory_space<vmem>>, vector<8x16xf32>
    %12 = arith.truncf %11 : vector<8x16xf32> to vector<8x16xbf16>
    %cst = arith.constant dense<0.000000e+00> : vector<8x32xf32>
    %13 = tpu.matmul %12, %0, %cst {dimension_numbers = #tpu.dot_dimension_numbers<[1], [0], [0], [1], [0, 0, 1, 1], [], []>} : vector<8x16xbf16>, vector<16x32xbf16>, vector<8x32xf32> -> vector<8x32xf32>
    %14 = vector.broadcast %7 : vector<1x32xf32> to vector<8x32xf32>
    %15 = arith.addf %13, %14 : vector<8x32xf32>
    %cst_10 = arith.constant 0.000000e+00 : f32
    %16 = vector.broadcast %cst_10 : f32 to vector<8x32xf32>
    %17 = arith.maximumf %15, %16 : vector<8x32xf32>
    %18 = arith.truncf %17 : vector<8x32xf32> to vector<8x32xbf16>
    %cst_11 = arith.constant dense<0.000000e+00> : vector<8x16xf32>
    %19 = tpu.matmul %18, %1, %cst_11 {dimension_numbers = #tpu.dot_dimension_numbers<[1], [0], [0], [1], [0, 0, 1, 1], [], []>} : vector<8x32xbf16>, vector<32x16xbf16>, vector<8x16xf32> -> vector<8x16xf32>
    %20 = vector.broadcast %8 : vector<1x16xf32> to vector<8x16xf32>
    %21 = arith.addf %19, %20 : vector<8x16xf32>
    %22 = arith.truncf %21 : vector<8x16xf32> to vector<8x16xbf16>
    %c0_12 = arith.constant 0 : index
    %c0_13 = arith.constant 0 : index
    %23 = vector.load %arg1[%c0_12, %c0_13] : memref<8x8xi8, #tpu.memory_space<vmem>>, vector<8x8xi8>
    %24 = arith.sitofp %23 : vector<8x8xi8> to vector<8x8xf32>
    %cst_14 = arith.constant 0.000000e+00 : f32
    %25 = vector.broadcast %cst_14 : f32 to vector<8x8xf32>
    %26 = arith.cmpf ogt, %24, %25 : vector<8x8xf32>
    %cst_15 = arith.constant 0.000000e+00 : f32
    %cst_16 = arith.constant -1.000000e+30 : f32
    %27 = vector.broadcast %cst_15 : f32 to vector<8x8xf32>
    %28 = vector.broadcast %cst_16 : f32 to vector<8x8xf32>
    %29 = arith.select %26, %27, %28 : vector<8x8xi1>, vector<8x8xf32>
    %cst_17 = arith.constant dense<0.000000e+00> : vector<8x2xf32>
    %30 = tpu.matmul %22, %5, %cst_17 {dimension_numbers = #tpu.dot_dimension_numbers<[1], [0], [0], [1], [0, 0, 1, 1], [], []>} : vector<8x16xbf16>, vector<16x2xbf16>, vector<8x2xf32> -> vector<8x2xf32>
    %cst_18 = arith.constant dense<0.000000e+00> : vector<2x8xf32>
    %31 = tpu.matmul %4, %22, %cst_18 {dimension_numbers = #tpu.dot_dimension_numbers<[0], [1], [1], [0], [0, 1, 1, 0], [], []>} : vector<16x2xbf16>, vector<8x16xbf16>, vector<2x8xf32> -> vector<2x8xf32>
    %cst_19 = arith.constant dense<0.000000e+00> : vector<8x32xf32>
    %32 = tpu.matmul %22, %2, %cst_19 {dimension_numbers = #tpu.dot_dimension_numbers<[1], [0], [0], [1], [0, 0, 1, 1], [], []>} : vector<8x16xbf16>, vector<16x32xbf16>, vector<8x32xf32> -> vector<8x32xf32>
    %cst_20 = arith.constant 0.000000e+00 : f32
    %33 = vector.broadcast %cst_20 : f32 to vector<8x16xf32>
    %34 = vector.extract_strided_slice %30 {offsets = [0, 0], sizes = [8, 1], strides = [1, 1]} : vector<8x2xf32> to vector<8x1xf32>
    %35 = vector.extract_strided_slice %31 {offsets = [0, 0], sizes = [1, 8], strides = [1, 1]} : vector<2x8xf32> to vector<1x8xf32>
    %36 = vector.broadcast %34 : vector<8x1xf32> to vector<8x8xf32>
    %37 = vector.broadcast %35 : vector<1x8xf32> to vector<8x8xf32>
    %38 = arith.addf %36, %37 : vector<8x8xf32>
    %cst_21 = arith.constant 0.000000e+00 : f32
    %39 = vector.broadcast %cst_21 : f32 to vector<8x8xf32>
    %40 = arith.cmpf oge, %38, %39 : vector<8x8xf32>
    %cst_22 = arith.constant 2.000000e-01 : f32
    %41 = vector.broadcast %cst_22 : f32 to vector<8x8xf32>
    %42 = arith.mulf %41, %38 : vector<8x8xf32>
    %43 = arith.select %40, %38, %42 : vector<8x8xi1>, vector<8x8xf32>
    %44 = arith.addf %43, %29 : vector<8x8xf32>
    %cst_23 = arith.constant dense<0xFF800000> : vector<8xf32>
    %45 = vector.multi_reduction <maximumf>, %44, %cst_23 [1] : vector<8x8xf32> to vector<8xf32>
    %46 = vector.shape_cast %45 : vector<8xf32> to vector<8x1xf32>
    %47 = vector.broadcast %46 : vector<8x1xf32> to vector<8x8xf32>
    %48 = arith.subf %44, %47 : vector<8x8xf32>
    %49 = math.exp %48 : vector<8x8xf32>
    %50 = arith.mulf %24, %49 : vector<8x8xf32>
    %cst_24 = arith.constant dense<0.000000e+00> : vector<8xf32>
    %51 = vector.multi_reduction <add>, %50, %cst_24 [1] : vector<8x8xf32> to vector<8xf32>
    %52 = vector.shape_cast %51 : vector<8xf32> to vector<8x1xf32>
    %53 = tpu.reciprocal %52 : vector<8x1xf32> -> vector<8x1xf32>
    %54 = vector.broadcast %53 : vector<8x1xf32> to vector<8x8xf32>
    %55 = arith.mulf %50, %54 : vector<8x8xf32>
    %56 = vector.extract_strided_slice %32 {offsets = [0, 0], sizes = [8, 16], strides = [1, 1]} : vector<8x32xf32> to vector<8x16xf32>
    %57 = arith.truncf %56 : vector<8x16xf32> to vector<8x16xbf16>
    %58 = arith.truncf %55 : vector<8x8xf32> to vector<8x8xbf16>
    %cst_25 = arith.constant dense<0.000000e+00> : vector<8x16xf32>
    %59 = tpu.matmul %58, %57, %cst_25 {dimension_numbers = #tpu.dot_dimension_numbers<[1], [0], [0], [1], [0, 0, 1, 1], [], []>} : vector<8x8xbf16>, vector<8x16xbf16>, vector<8x16xf32> -> vector<8x16xf32>
    %60 = arith.addf %33, %59 : vector<8x16xf32>
    %61 = vector.extract_strided_slice %30 {offsets = [0, 1], sizes = [8, 1], strides = [1, 1]} : vector<8x2xf32> to vector<8x1xf32>
    %62 = vector.extract_strided_slice %31 {offsets = [1, 0], sizes = [1, 8], strides = [1, 1]} : vector<2x8xf32> to vector<1x8xf32>
    %63 = vector.broadcast %61 : vector<8x1xf32> to vector<8x8xf32>
    %64 = vector.broadcast %62 : vector<1x8xf32> to vector<8x8xf32>
    %65 = arith.addf %63, %64 : vector<8x8xf32>
    %cst_26 = arith.constant 0.000000e+00 : f32
    %66 = vector.broadcast %cst_26 : f32 to vector<8x8xf32>
    %67 = arith.cmpf oge, %65, %66 : vector<8x8xf32>
    %cst_27 = arith.constant 2.000000e-01 : f32
    %68 = vector.broadcast %cst_27 : f32 to vector<8x8xf32>
    %69 = arith.mulf %68, %65 : vector<8x8xf32>
    %70 = arith.select %67, %65, %69 : vector<8x8xi1>, vector<8x8xf32>
    %71 = arith.addf %70, %29 : vector<8x8xf32>
    %cst_28 = arith.constant dense<0xFF800000> : vector<8xf32>
    %72 = vector.multi_reduction <maximumf>, %71, %cst_28 [1] : vector<8x8xf32> to vector<8xf32>
    %73 = vector.shape_cast %72 : vector<8xf32> to vector<8x1xf32>
    %74 = vector.broadcast %73 : vector<8x1xf32> to vector<8x8xf32>
    %75 = arith.subf %71, %74 : vector<8x8xf32>
    %76 = math.exp %75 : vector<8x8xf32>
    %77 = arith.mulf %24, %76 : vector<8x8xf32>
    %cst_29 = arith.constant dense<0.000000e+00> : vector<8xf32>
    %78 = vector.multi_reduction <add>, %77, %cst_29 [1] : vector<8x8xf32> to vector<8xf32>
    %79 = vector.shape_cast %78 : vector<8xf32> to vector<8x1xf32>
    %80 = tpu.reciprocal %79 : vector<8x1xf32> -> vector<8x1xf32>
    %81 = vector.broadcast %80 : vector<8x1xf32> to vector<8x8xf32>
    %82 = arith.mulf %77, %81 : vector<8x8xf32>
    %83 = vector.extract_strided_slice %32 {offsets = [0, 16], sizes = [8, 16], strides = [1, 1]} : vector<8x32xf32> to vector<8x16xf32>
    %84 = arith.truncf %83 : vector<8x16xf32> to vector<8x16xbf16>
    %85 = arith.truncf %82 : vector<8x8xf32> to vector<8x8xbf16>
    %cst_30 = arith.constant dense<0.000000e+00> : vector<8x16xf32>
    %86 = tpu.matmul %85, %84, %cst_30 {dimension_numbers = #tpu.dot_dimension_numbers<[1], [0], [0], [1], [0, 0, 1, 1], [], []>} : vector<8x8xbf16>, vector<8x16xbf16>, vector<8x16xf32> -> vector<8x16xf32>
    %87 = arith.addf %60, %86 : vector<8x16xf32>
    %cst_31 = arith.constant 5.000000e-01 : f32
    %88 = vector.broadcast %cst_31 : f32 to vector<8x16xf32>
    %89 = arith.mulf %87, %88 : vector<8x16xf32>
    %90 = vector.broadcast %9 : vector<1x16xf32> to vector<8x16xf32>
    %91 = arith.addf %89, %90 : vector<8x16xf32>
    %cst_32 = arith.constant 0.000000e+00 : f32
    %92 = vector.broadcast %cst_32 : f32 to vector<8x16xf32>
    %93 = arith.cmpf oge, %91, %92 : vector<8x16xf32>
    %cst_33 = arith.constant 0.00999999977 : f32
    %94 = vector.broadcast %cst_33 : f32 to vector<8x16xf32>
    %95 = arith.mulf %94, %91 : vector<8x16xf32>
    %96 = arith.select %93, %91, %95 : vector<8x16xi1>, vector<8x16xf32>
    %97 = arith.addf %96, %21 : vector<8x16xf32>
    %98 = arith.truncf %97 : vector<8x16xf32> to vector<8x16xbf16>
    %cst_34 = arith.constant dense<0.000000e+00> : vector<8x16xf32>
    %99 = tpu.matmul %98, %3, %cst_34 {dimension_numbers = #tpu.dot_dimension_numbers<[1], [0], [0], [1], [0, 0, 1, 1], [], []>} : vector<8x16xbf16>, vector<16x16xbf16>, vector<8x16xf32> -> vector<8x16xf32>
    %100 = vector.broadcast %10 : vector<1x16xf32> to vector<8x16xf32>
    %101 = arith.addf %99, %100 : vector<8x16xf32>
    %c0_35 = arith.constant 0 : index
    %c0_36 = arith.constant 0 : index
    %102 = vector.load %arg4[%c0_35, %c0_36] : memref<8x16xf32, #tpu.memory_space<vmem>>, vector<8x16xf32>
    tpu.vector_store %arg4[%c0_35, %c0_36], %101 {strides = array<i32>} : memref<8x16xf32, #tpu.memory_space<vmem>>, vector<8x16xf32>,
    return
  }
}

</mosaic_0001>

<llo_original>
// kernel: tpu_custom_call.1
$region0: #{tpu_custom_call.1}
  #allocation0 [shape = 'u32[]', space=smem, size = 0x4, offset = 0x4, fixed_abs, tag = 'smem constant byte address 0x4 - core index']
  #allocation1 [shape = 'u32[144,128]{1,0:T(1,128)}', space=vmem, size = 0x12000, scoped, tag = 'internal scratch']
  %s0 = inlined_call_operand.vmem [shape: f32[8,16], index: 0, kind: input, shape index: {}]
  %s1 = inlined_call_operand.vmem [shape: s8[8,8], index: 1, kind: input, shape index: {}]
  %s2 = inlined_call_operand.vmem [shape: bf16[112,32], index: 2, kind: input, shape index: {}]
  %s3 = inlined_call_operand.vmem [shape: f32[4,32], index: 3, kind: input, shape index: {}]
  %s4 = inlined_call_operand.hbm [shape: f32[8,16], index: 4, kind: output, shape index: {}]
  %s5 = sld [smem:[#allocation0]]
  $region26: #{tpu_custom_call.1} parent=0
    _
  %s7 = ssub.s32 1, %s5
  %s8 = scalar_select 0, %s7, %s5
  $region1: #{tpu_custom_call.1} parent=0
    #allocation2 [shape = 'u8[4096]{0}', space=vmem, size = 0x1000, scoped, tag = 'output window, operand 0, single buffered']
    #allocation3 [shape = 's32[1]{0}', space=sflag, size = 0x4, scoped, tag = 'scoped memory for tpu_custom_call.1']
    %9 = vsyncpa [#allocation3], 0
    // Predicated region
    $region2: #{tpu_custom_call.1} parent=1 // pred_check
      _
    $region3: #{tpu_custom_call.1} parent=1 // pred_check_branch
      %11 = sbr.rel (0) target = $region5
    $region4: #{tpu_custom_call.1} parent=1 // pred_region
      _
    $region5: #{tpu_custom_call.1} parent=1 // pred_fallthru
      _
    // Predicated region
    $region6: #{tpu_custom_call.1} parent=1 // pred_check
      _
    $region7: #{tpu_custom_call.1} parent=1 // pred_check_branch
      %13 = sbr.rel (0) target = $region9
    $region8: #{tpu_custom_call.1} parent=1 // pred_region
      _
    $region9: #{tpu_custom_call.1} parent=1 // pred_fallthru
      _
    // Predicated region
    $region10: #{tpu_custom_call.1} parent=1 // pred_check
      _
    $region11: #{tpu_custom_call.1} parent=1 // pred_check_branch
      %15 = sbr.rel (0) target = $region13
    $region12: #{tpu_custom_call.1} parent=1 // pred_region
      _
    $region13: #{tpu_custom_call.1} parent=1 // pred_fallthru
      _
    // Predicated region
    $region14: #{tpu_custom_call.1} parent=1 // pred_check
      _
    $region15: #{tpu_custom_call.1} parent=1 // pred_check_branch
      %17 = sbr.rel (0) target = $region17
    $region16: #{tpu_custom_call.1} parent=1 // pred_region
      _
    $region17: #{tpu_custom_call.1} parent=1 // pred_fallthru
      _
    %v19 = vld [vmem:[%s2] sm:$0xf]
    %v20 = vld [vmem:[%s2 + $0x4] sm:$0xf]
    %v21 = vld [vmem:[%s2 + $0x8] sm:$0xf]
    %v22 = vld [vmem:[%s2 + $0xc] sm:$0xf]
    %v23 = vld [vmem:[%s2 + $0x10] sm:$0xf]
    %v24 = vld [vmem:[%s2 + $0x14] sm:$0xf]
    %v25 = vld [vmem:[%s2 + $0x18] sm:$0xf]
    %v26 = vld [vmem:[%s2 + $0x1c] sm:$0xf]
    %v27 = vld [vmem:[%s2 + $0x20] sm:$0xf]
    %v28 = vld [vmem:[%s2 + $0x24] sm:$0xf]
    %v29 = vld [vmem:[%s2 + $0x28] sm:$0xf]
    %v30 = vld [vmem:[%s2 + $0x2c] sm:$0xf]
    %v31 = vld [vmem:[%s2 + $0x30] sm:$0xf]
    %v32 = vld [vmem:[%s2 + $0x34] sm:$0xf]
    %v33 = vld [vmem:[%s3] sm:$0xf]
    %v34 = vld [vmem:[%s0] sm:$0xff]
    %v35 = vpack.c.bf16 %v34, %v34
    %v36 = vlaneseq
    %v37 = vshrl.u32 %v36, 7
    %v38 = vsub.s32 0, %v37
    %v39 = vrot.slane %v33, %v38
    %v42 = vunpack.c.l.b16 %v19
    %v43 = vunpack.c.l.b16 %v20
    %v44 = vpack.c.b16 %v43, %v42
    %vm46 = vcmask 130048
    %v48 = vsel %vm46, %v35, 0
    %50 = vmatprep.subr.bf16.mxu0 0
    %51 = vmatpush1.bf16.msra.mxu0 0
    %52 = vmatprep.subr.bf16.mxu0 0
    %53 = vmatpush1.bf16.msra.mxu0 0
    %54 = vmatprep.subr.bf16.mxu0 0
    %55 = vmatpush1.bf16.msra.mxu0 0
    %56 = vmatprep.subr.bf16.mxu0 0
    %57 = vmatpush1.bf16.msra.mxu0 0
    %58 = vmatprep.subr.bf16.mxu0 0
    %59 = vmatpush1.bf16.msra.mxu0 0
    %60 = vmatprep.subr.bf16.mxu0 0
    %61 = vmatpush1.bf16.msra.mxu0 0
    %62 = vmatprep.subr.bf16.mxu0 0
    %63 = vmatpush1.bf16.msra.mxu0 0
    %64 = vmatprep.subr.bf16.mxu0 0
    %65 = vmatpush1.bf16.msra.mxu0 %v44
    %66 = vmatprep.subr.bf16.mxu0 0
    %67 = vmatpush2.bf16.msra.mxu0 0
    %68 = vmatprep.subr.bf16.mxu0 0
    %69 = vmatpush2.bf16.msra.mxu0 0
    %70 = vmatprep.subr.bf16.mxu0 0
    %71 = vmatpush2.bf16.msra.mxu0 0
    %72 = vmatprep.subr.bf16.mxu0 0
    %73 = vmatpush2.bf16.msra.mxu0 0
    %74 = vmatprep.subr.bf16.mxu0 0
    %75 = vmatpush2.bf16.msra.mxu0 0
    %76 = vmatprep.subr.bf16.mxu0 0
    %77 = vmatpush2.bf16.msra.mxu0 0
    %78 = vmatprep.subr.bf16.mxu0 0
    %79 = vmatpush2.bf16.msra.mxu0 0
    %80 = vmatprep.subr.bf16.mxu0 0
    %81 = vmatpush2.bf16.msra.mxu0 0
    %82 = vmatprep.mubr.bf16.mxu0 0
    %83 = vmatmul.mubr.bf16.gmra.mxu0 %v48
    %v84 = vpop.f32.mrf.mxu0
    %v85 = vadd.f32 %v39, %v84
    %v86 = vpop.f32.mrf.mxu0
    %v87 = vpop.f32.mrf.mxu0
    %v88 = vpop.f32.mrf.mxu0
    %89 = vdwg.mxu0
    %v90 = vmax.f32 %v85, 0.0
    %v91 = vpack.c.bf16 %v90, %v90
    %v92 = vlaneseq
    %v93 = vshrl.u32 %v92, 7
    %v94 = vsub.s32 1, %v93
    %v95 = vrot.slane %v33, %v94
    %v100 = vunpack.c.l.b16 %v21
    %v101 = vunpack.c.l.b16 %v22
    %v102 = vunpack.c.l.b16 %v23
    %v103 = vunpack.c.l.b16 %v24
    %v104 = vpack.c.b16 %v101, %v100
    %v105 = vpack.c.b16 %v103, %v102
    %vm108 = vcmask 261120
    %v110 = vsel %vm108, %v91, 0
    %112 = vmatprep.subr.bf16.mxu0 0
    %113 = vmatpush1.bf16.msra.mxu0 0
    %114 = vmatprep.subr.bf16.mxu0 0
    %115 = vmatpush1.bf16.msra.mxu0 0
    %116 = vmatprep.subr.bf16.mxu0 0
    %117 = vmatpush1.bf16.msra.mxu0 0
    %118 = vmatprep.subr.bf16.mxu0 0
    %119 = vmatpush1.bf16.msra.mxu0 0
    %120 = vmatprep.subr.bf16.mxu0 0
    %121 = vmatpush1.bf16.msra.mxu0 0
    %122 = vmatprep.subr.bf16.mxu0 0
    %123 = vmatpush1.bf16.msra.mxu0 0
    %124 = vmatprep.subr.bf16.mxu0 0
    %125 = vmatpush1.bf16.msra.mxu0 %v105
    %126 = vmatprep.subr.bf16.mxu0 0
    %127 = vmatpush1.bf16.msra.mxu0 %v104
    %128 = vmatprep.subr.bf16.mxu0 0
    %129 = vmatpush2.bf16.msra.mxu0 0
    %130 = vmatprep.subr.bf16.mxu0 0
    %131 = vmatpush2.bf16.msra.mxu0 0
    %132 = vmatprep.subr.bf16.mxu0 0
    %133 = vmatpush2.bf16.msra.mxu0 0
    %134 = vmatprep.subr.bf16.mxu0 0
    %135 = vmatpush2.bf16.msra.mxu0 0
    %136 = vmatprep.subr.bf16.mxu0 0
    %137 = vmatpush2.bf16.msra.mxu0 0
    %138 = vmatprep.subr.bf16.mxu0 0
    %139 = vmatpush2.bf16.msra.mxu0 0
    %140 = vmatprep.subr.bf16.mxu0 0
    %141 = vmatpush2.bf16.msra.mxu0 0
    %142 = vmatprep.subr.bf16.mxu0 0
    %143 = vmatpush2.bf16.msra.mxu0 0
    %144 = vmatprep.mubr.bf16.mxu0 0
    %145 = vmatmul.mubr.bf16.gmra.mxu0 %v110
    %v146 = vpop.f32.mrf.mxu0
    %v147 = vadd.f32 %v95, %v146
    %v148 = vpop.f32.mrf.mxu0
    %v149 = vpop.f32.mrf.mxu0
    %v150 = vpop.f32.mrf.mxu0
    %151 = vdwg.mxu0
    %v152 = vpack.c.bf16 %v147, %v147
    %v153 = vld [vmem:[%s1] sm:$0x3]
    %v154 = vunpack.c.0.s8 %v153
    %v155 = vcvt.s32.f32 %v154
    %vm156 = vcmp.gt.f32.partialorder %v155, 0.0
    %v157 = vsel %vm156, 0.0, -1e+30
    %v160 = vunpack.c.l.b16 %v31
    %v161 = vunpack.c.l.b16 %v32
    %v162 = vpack.c.b16 %v161, %v160
    %v165 = vsel %vm46, %v152, 0
    %167 = vmatprep.subr.bf16.mxu0 0
    %168 = vmatpush1.bf16.msra.mxu0 0
    %169 = vmatprep.subr.bf16.mxu0 0
    %170 = vmatpush1.bf16.msra.mxu0 0
    %171 = vmatprep.subr.bf16.mxu0 0
    %172 = vmatpush1.bf16.msra.mxu0 0
    %173 = vmatprep.subr.bf16.mxu0 0
    %174 = vmatpush1.bf16.msra.mxu0 0
    %175 = vmatprep.subr.bf16.mxu0 0
    %176 = vmatpush1.bf16.msra.mxu0 0
    %177 = vmatprep.subr.bf16.mxu0 0
    %178 = vmatpush1.bf16.msra.mxu0 0
    %179 = vmatprep.subr.bf16.mxu0 0
    %180 = vmatpush1.bf16.msra.mxu0 0
    %181 = vmatprep.subr.bf16.mxu0 0
    %182 = vmatpush1.bf16.msra.mxu0 %v162
    %183 = vmatprep.subr.bf16.mxu0 0
    %184 = vmatpush2.bf16.msra.mxu0 0
    %185 = vmatprep.subr.bf16.mxu0 0
    %186 = vmatpush2.bf16.msra.mxu0 0
    %187 = vmatprep.subr.bf16.mxu0 0
    %188 = vmatpush2.bf16.msra.mxu0 0
    %189 = vmatprep.subr.bf16.mxu0 0
    %190 = vmatpush2.bf16.msra.mxu0 0
    %191 = vmatprep.subr.bf16.mxu0 0
    %192 = vmatpush2.bf16.msra.mxu0 0
    %193 = vmatprep.subr.bf16.mxu0 0
    %194 = vmatpush2.bf16.msra.mxu0 0
    %195 = vmatprep.subr.bf16.mxu0 0
    %196 = vmatpush2.bf16.msra.mxu0 0
    %197 = vmatprep.subr.bf16.mxu0 0
    %198 = vmatpush2.bf16.msra.mxu0 0
    %199 = vmatprep.mubr.bf16.mxu0 0
    %200 = vmatmul.mubr.bf16.gmra.mxu0 %v165
    %v201 = vpop.f32.mrf.mxu0
    %v202 = vadd.f32 0.0, %v201
    %v203 = vpop.f32.mrf.mxu0
    %v204 = vpop.f32.mrf.mxu0
    %v205 = vpop.f32.mrf.mxu0
    %206 = vdwg.mxu0
    %v209 = vunpack.c.l.b16 %v29
    %v210 = vunpack.c.l.b16 %v30
    %v211 = vpack.c.b16 %v210, %v209
    %213 = vxpose.xlu0.c.b16.start [1/8] %v211, 128
    %214 = vxpose.xlu0.c.b16.cont [2/8] 0, 128
    %215 = vxpose.xlu0.c.b16.cont [3/8] 0, 128
    %216 = vxpose.xlu0.c.b16.cont [4/8] 0, 128
    %217 = vxpose.xlu0.c.b16.cont [5/8] 0, 128
    %218 = vxpose.xlu0.c.b16.cont [6/8] 0, 128
    %219 = vxpose.xlu0.c.b16.cont [7/8] 0, 128
    %220 = vxpose.xlu0.c.b16.end [8/8] 0, 128
    %v221 = vpop.trf.xlu0
    %v222 = vpop.trf.xlu0
    %v223 = vpop.trf.xlu0
    %v224 = vpop.trf.xlu0
    %v225 = vpop.trf.xlu0
    %v226 = vpop.trf.xlu0
    %v227 = vpop.trf.xlu0
    %v228 = vpop.trf.xlu0
    %v230 = vsel %vm46, %v221, 0
    %232 = vmatprep.subr.bf16.mxu0 0
    %233 = vmatpush1.bf16.xpose.msra.mxu0 0
    %234 = vmatprep.subr.bf16.mxu0 0
    %235 = vmatpush1.bf16.xpose.msra.mxu0 0
    %236 = vmatprep.subr.bf16.mxu0 0
    %237 = vmatpush1.bf16.xpose.msra.mxu0 0
    %238 = vmatprep.subr.bf16.mxu0 0
    %239 = vmatpush1.bf16.xpose.msra.mxu0 0
    %240 = vmatprep.subr.bf16.mxu0 0
    %241 = vmatpush1.bf16.xpose.msra.mxu0 0
    %242 = vmatprep.subr.bf16.mxu0 0
    %243 = vmatpush1.bf16.xpose.msra.mxu0 0
    %244 = vmatprep.subr.bf16.mxu0 0
    %245 = vmatpush1.bf16.xpose.msra.mxu0 0
    %246 = vmatprep.subr.bf16.mxu0 0
    %247 = vmatpush1.bf16.xpose.msra.mxu0 %v165
    %248 = vmatprep.subr.bf16.mxu0 0
    %249 = vmatpush2.bf16.xpose.msra.mxu0 0
    %250 = vmatprep.subr.bf16.mxu0 0
    %251 = vmatpush2.bf16.xpose.msra.mxu0 0
    %252 = vmatprep.subr.bf16.mxu0 0
    %253 = vmatpush2.bf16.xpose.msra.mxu0 0
    %254 = vmatprep.subr.bf16.mxu0 0
    %255 = vmatpush2.bf16.xpose.msra.mxu0 0
    %256 = vmatprep.subr.bf16.mxu0 0
    %257 = vmatpush2.bf16.xpose.msra.mxu0 0
    %258 = vmatprep.subr.bf16.mxu0 0
    %259 = vmatpush2.bf16.xpose.msra.mxu0 0
    %260 = vmatprep.subr.bf16.mxu0 0
    %261 = vmatpush2.bf16.xpose.msra.mxu0 0
    %262 = vmatprep.subr.bf16.mxu0 0
    %263 = vmatpush2.bf16.xpose.msra.mxu0 0
    %264 = vmatprep.mubr.bf16.mxu0 0
    %265 = vmatmul.mubr.bf16.gmra.mxu0 %v230
    %v266 = vpop.f32.mrf.mxu0
    %v267 = vadd.f32 0.0, %v266
    %v268 = vpop.f32.mrf.mxu0
    %v269 = vpop.f32.mrf.mxu0
    %v270 = vpop.f32.mrf.mxu0
    %271 = vdwg.mxu0
    %v274 = vunpack.c.l.b16 %v25
    %v275 = vunpack.c.l.b16 %v26
    %v276 = vpack.c.b16 %v275, %v274
    %278 = vmatprep.subr.bf16.mxu0 0
    %279 = vmatpush1.bf16.msra.mxu0 0
    %280 = vmatprep.subr.bf16.mxu0 0
    %281 = vmatpush1.bf16.msra.mxu0 0
    %282 = vmatprep.subr.bf16.mxu0 0
    %283 = vmatpush1.bf16.msra.mxu0 0
    %284 = vmatprep.subr.bf16.mxu0 0
    %285 = vmatpush1.bf16.msra.mxu0 0
    %286 = vmatprep.subr.bf16.mxu0 0
    %287 = vmatpush1.bf16.msra.mxu0 0
    %288 = vmatprep.subr.bf16.mxu0 0
    %289 = vmatpush1.bf16.msra.mxu0 0
    %290 = vmatprep.subr.bf16.mxu0 0
    %291 = vmatpush1.bf16.msra.mxu0 0
    %292 = vmatprep.subr.bf16.mxu0 0
    %293 = vmatpush1.bf16.msra.mxu0 %v276
    %294 = vmatprep.subr.bf16.mxu0 0
    %295 = vmatpush2.bf16.msra.mxu0 0
    %296 = vmatprep.subr.bf16.mxu0 0
    %297 = vmatpush2.bf16.msra.mxu0 0
    %298 = vmatprep.subr.bf16.mxu0 0
    %299 = vmatpush2.bf16.msra.mxu0 0
    %300 = vmatprep.subr.bf16.mxu0 0
    %301 = vmatpush2.bf16.msra.mxu0 0
    %302 = vmatprep.subr.bf16.mxu0 0
    %303 = vmatpush2.bf16.msra.mxu0 0
    %304 = vmatprep.subr.bf16.mxu0 0
    %305 = vmatpush2.bf16.msra.mxu0 0
    %306 = vmatprep.subr.bf16.mxu0 0
    %307 = vmatpush2.bf16.msra.mxu0 0
    %308 = vmatprep.subr.bf16.mxu0 0
    %309 = vmatpush2.bf16.msra.mxu0 0
    %310 = vmatprep.mubr.bf16.mxu0 0
    %311 = vmatmul.mubr.bf16.gmra.mxu0 %v165
    %v312 = vpop.f32.mrf.mxu0
    %v313 = vadd.f32 0.0, %v312
    %v314 = vpop.f32.mrf.mxu0
    %v315 = vpop.f32.mrf.mxu0
    %v316 = vpop.f32.mrf.mxu0
    %317 = vdwg.mxu0
    %319 = vset.pattern.permute.xlu0 0
    %320 = vperm.xlu0 %319, %v202
    %v321 = vpop.permute.xlu0 %320
    %v323 = vlaneseq
    %v324 = vshrl.u32 %v323, 7
    %v325 = vsub.s32 0, %v324
    %v326 = vrot.slane %v267, %v325
    %v327 = vadd.f32 %v321, %v326
    %vm328 = vcmp.ge.f32.partialorder %v327, 0.0
    %v329 = vmul.f32 %v327, 0.2
    %v330 = vsel %vm328, %v327, %v329
    %v331 = vadd.f32 %v330, %v157
    %vm332 = vcmask 64512
    %v333 = vsel %vm332, %v331, -inf
    %334 = vmax.xlane.f32.xlu0 %v333
    %v335 = vpop.xlane.xlu0 %334
    %v336 = vsub.f32 %v331, %v335
    %v337 = vmul.f32 %v336, 1.442695
    %v338 = vpow.pop %v337
    %v339 = vmul.f32 %v155, %v338
    %v340 = vsel %vm332, %v339, 0.0
    %341 = vadd.xlane.f32.xlu0 %v340
    %v342 = vpop.xlane.xlu0 %341
    %v343 = vrcp.pop %v342
    %v344 = vmul.f32 %v339, %v343
    %v345 = vpack.c.bf16 %v313, %v313
    %v346 = vpack.c.bf16 %v344, %v344
    %347 = vset.pattern.permute.xlu0 1
    %348 = vperm.xlu0 %347, %v202
    %v349 = vpop.permute.xlu0 %348
    %v351 = vlaneseq
    %v352 = vshrl.u32 %v351, 7
    %v353 = vsub.s32 1, %v352
    %v354 = vrot.slane %v267, %v353
    %v355 = vadd.f32 %v349, %v354
    %vm356 = vcmp.ge.f32.partialorder %v355, 0.0
    %v357 = vmul.f32 %v355, 0.2
    %v358 = vsel %vm356, %v355, %v357
    %v359 = vadd.f32 %v358, %v157
    %v360 = vsel %vm332, %v359, -inf
    %361 = vmax.xlane.f32.xlu0 %v360
    %v362 = vpop.xlane.xlu0 %361
    %v363 = vsub.f32 %v359, %v362
    %v364 = vmul.f32 %v363, 1.442695
    %v365 = vpow.pop %v364
    %v366 = vmul.f32 %v155, %v365
    %v367 = vsel %vm332, %v366, 0.0
    %368 = vadd.xlane.f32.xlu0 %v367
    %v369 = vpop.xlane.xlu0 %368
    %v370 = vrcp.pop %v369
    %v371 = vmul.f32 %v366, %v370
    %v372 = vpack.c.bf16 %v371, %v371
    %374 = vrot.lane.b32.xlu0 %v345, 112
    %v375 = vpop.permute.xlu0 %374
    %v377 = vsel %vm332, %v372, 0
    %vm379 = vcmask 1043456
    %v381 = vsel %vm379, %v375, 0
    %383 = vmatprep.subr.bf16.mxu0 0
    %384 = vmatpush1.bf16.msra.mxu0 0
    %385 = vmatprep.subr.bf16.mxu0 0
    %386 = vmatpush1.bf16.msra.mxu0 0
    %387 = vmatprep.subr.bf16.mxu0 0
    %388 = vmatpush1.bf16.msra.mxu0 0
    %389 = vmatprep.subr.bf16.mxu0 0
    %390 = vmatpush1.bf16.msra.mxu0 0
    %391 = vmatprep.subr.bf16.mxu0 0
    %392 = vmatpush1.bf16.msra.mxu0 0
    %393 = vmatprep.subr.bf16.mxu0 0
    %394 = vmatpush1.bf16.msra.mxu0 0
    %395 = vmatprep.subr.bf16.mxu0 0
    %396 = vmatpush1.bf16.msra.mxu0 0
    %397 = vmatprep.subr.bf16.mxu0 0
    %398 = vmatpush1.bf16.msra.mxu0 %v381
    %399 = vmatprep.subr.bf16.mxu0 0
    %400 = vmatpush2.bf16.msra.mxu0 0
    %401 = vmatprep.subr.bf16.mxu0 0
    %402 = vmatpush2.bf16.msra.mxu0 0
    %403 = vmatprep.subr.bf16.mxu0 0
    %404 = vmatpush2.bf16.msra.mxu0 0
    %405 = vmatprep.subr.bf16.mxu0 0
    %406 = vmatpush2.bf16.msra.mxu0 0
    %407 = vmatprep.subr.bf16.mxu0 0
    %408 = vmatpush2.bf16.msra.mxu0 0
    %409 = vmatprep.subr.bf16.mxu0 0
    %410 = vmatpush2.bf16.msra.mxu0 0
    %411 = vmatprep.subr.bf16.mxu0 0
    %412 = vmatpush2.bf16.msra.mxu0 0
    %413 = vmatprep.subr.bf16.mxu0 0
    %414 = vmatpush2.bf16.msra.mxu0 0
    %415 = vmatprep.mubr.bf16.mxu0 0
    %416 = vmatmul.mubr.bf16.gmra.mxu0 %v377
    %v417 = vpop.f32.mrf.mxu0
    %v418 = vadd.f32 0.0, %v417
    %v419 = vpop.f32.mrf.mxu0
    %v420 = vpop.f32.mrf.mxu0
    %v421 = vpop.f32.mrf.mxu0
    %422 = vdwg.mxu0
    %v424 = vsel %vm332, %v346, 0
    %v427 = vsel %vm379, %v345, 0
    %429 = vmatprep.subr.bf16.mxu0 0
    %430 = vmatpush1.bf16.msra.mxu0 0
    %431 = vmatprep.subr.bf16.mxu0 0
    %432 = vmatpush1.bf16.msra.mxu0 0
    %433 = vmatprep.subr.bf16.mxu0 0
    %434 = vmatpush1.bf16.msra.mxu0 0
    %435 = vmatprep.subr.bf16.mxu0 0
    %436 = vmatpush1.bf16.msra.mxu0 0
    %437 = vmatprep.subr.bf16.mxu0 0
    %438 = vmatpush1.bf16.msra.mxu0 0
    %439 = vmatprep.subr.bf16.mxu0 0
    %440 = vmatpush1.bf16.msra.mxu0 0
    %441 = vmatprep.subr.bf16.mxu0 0
    %442 = vmatpush1.bf16.msra.mxu0 0
    %443 = vmatprep.subr.bf16.mxu0 0
    %444 = vmatpush1.bf16.msra.mxu0 %v427
    %445 = vmatprep.subr.bf16.mxu0 0
    %446 = vmatpush2.bf16.msra.mxu0 0
    %447 = vmatprep.subr.bf16.mxu0 0
    %448 = vmatpush2.bf16.msra.mxu0 0
    %449 = vmatprep.subr.bf16.mxu0 0
    %450 = vmatpush2.bf16.msra.mxu0 0
    %451 = vmatprep.subr.bf16.mxu0 0
    %452 = vmatpush2.bf16.msra.mxu0 0
    %453 = vmatprep.subr.bf16.mxu0 0
    %454 = vmatpush2.bf16.msra.mxu0 0
    %455 = vmatprep.subr.bf16.mxu0 0
    %456 = vmatpush2.bf16.msra.mxu0 0
    %457 = vmatprep.subr.bf16.mxu0 0
    %458 = vmatpush2.bf16.msra.mxu0 0
    %459 = vmatprep.subr.bf16.mxu0 0
    %460 = vmatpush2.bf16.msra.mxu0 0
    %461 = vmatprep.mubr.bf16.mxu0 0
    %462 = vmatmul.mubr.bf16.gmra.mxu0 %v424
    %v463 = vpop.f32.mrf.mxu0
    %v464 = vadd.f32 %v418, %v463
    %v465 = vpop.f32.mrf.mxu0
    %v466 = vpop.f32.mrf.mxu0
    %v467 = vpop.f32.mrf.mxu0
    %468 = vdwg.mxu0
    %v469 = vmul.f32 %v464, 0.5
    %v470 = vlaneseq
    %v471 = vshrl.u32 %v470, 7
    %v472 = vsub.s32 2, %v471
    %v473 = vrot.slane %v33, %v472
    %v474 = vadd.f32 %v469, %v473
    %vm475 = vcmp.ge.f32.partialorder %v474, 0.0
    %v476 = vmul.f32 %v474, 0.01
    %v477 = vsel %vm475, %v474, %v476
    %v478 = vadd.f32 %v477, %v147
    %v479 = vpack.c.bf16 %v478, %v478
    %v480 = vlaneseq
    %v481 = vshrl.u32 %v480, 7
    %v482 = vsub.s32 3, %v481
    %v483 = vrot.slane %v33, %v482
    %v486 = vunpack.c.l.b16 %v27
    %v487 = vunpack.c.l.b16 %v28
    %v488 = vpack.c.b16 %v487, %v486
    %v491 = vsel %vm46, %v479, 0
    %493 = vmatprep.subr.bf16.mxu0 0
    %494 = vmatpush1.bf16.msra.mxu0 0
    %495 = vmatprep.subr.bf16.mxu0 0
    %496 = vmatpush1.bf16.msra.mxu0 0
    %497 = vmatprep.subr.bf16.mxu0 0
    %498 = vmatpush1.bf16.msra.mxu0 0
    %499 = vmatprep.subr.bf16.mxu0 0
    %500 = vmatpush1.bf16.msra.mxu0 0
    %501 = vmatprep.subr.bf16.mxu0 0
    %502 = vmatpush1.bf16.msra.mxu0 0
    %503 = vmatprep.subr.bf16.mxu0 0
    %504 = vmatpush1.bf16.msra.mxu0 0
    %505 = vmatprep.subr.bf16.mxu0 0
    %506 = vmatpush1.bf16.msra.mxu0 0
    %507 = vmatprep.subr.bf16.mxu0 0
    %508 = vmatpush1.bf16.msra.mxu0 %v488
    %509 = vmatprep.subr.bf16.mxu0 0
    %510 = vmatpush2.bf16.msra.mxu0 0
    %511 = vmatprep.subr.bf16.mxu0 0
    %512 = vmatpush2.bf16.msra.mxu0 0
    %513 = vmatprep.subr.bf16.mxu0 0
    %514 = vmatpush2.bf16.msra.mxu0 0
    %515 = vmatprep.subr.bf16.mxu0 0
    %516 = vmatpush2.bf16.msra.mxu0 0
    %517 = vmatprep.subr.bf16.mxu0 0
    %518 = vmatpush2.bf16.msra.mxu0 0
    %519 = vmatprep.subr.bf16.mxu0 0
    %520 = vmatpush2.bf16.msra.mxu0 0
    %521 = vmatprep.subr.bf16.mxu0 0
    %522 = vmatpush2.bf16.msra.mxu0 0
    %523 = vmatprep.subr.bf16.mxu0 0
    %524 = vmatpush2.bf16.msra.mxu0 0
    %525 = vmatprep.mubr.bf16.mxu0 0
    %526 = vmatmul.mubr.bf16.gmra.mxu0 %v491
    %v527 = vpop.f32.mrf.mxu0
    %v528 = vadd.f32 %v483, %v527
    %v529 = vpop.f32.mrf.mxu0
    %v530 = vpop.f32.mrf.mxu0
    %v531 = vpop.f32.mrf.mxu0
    %532 = vdwg.mxu0
    %533 = vst.msk [vmem:[#allocation2] sm:$0xff] %vm46, %v528
    // Predicated region
    $region18: #{tpu_custom_call.1} parent=1 // pred_check
      _
    $region19: #{tpu_custom_call.1} parent=1 // pred_check_branch
      %535 = sbr.rel (0) target = $region21
    $region20: #{tpu_custom_call.1} parent=1 // pred_region
      %s537 = ssub.s32 128, 128
      %538 = vsyncadd [#allocation3], %s537
      %s540 = sshll.u32 [#allocation2], 4
      %s541 = int_to_ptr.vmem [resolvable:$true] %s540
      %543 = dma.vmem_to_hbm [thread:$0]  %s541, 128, %s4, [#allocation3]
    $region21: #{tpu_custom_call.1} parent=1 // pred_fallthru
      _
    // Predicated region
    $region22: #{tpu_custom_call.1} parent=1 // pred_check
      _
    $region23: #{tpu_custom_call.1} parent=1 // pred_check_branch
      %545 = sbr.rel (0) target = $region25
    $region24: #{tpu_custom_call.1} parent=1 // pred_region
      %546 = dma.done [#allocation3], 128
    $region25: #{tpu_custom_call.1} parent=1 // pred_fallthru
      _
    %547 = vsyncpa [#allocation3], 1

</llo_original>
